<compile_context>
chip_gen: v7x
topology: tpu7x:2x2x1
jax: 0.10.0
libtpu: 0.0.40
codegen_flags: <defaults>
</compile_context>

<pallas_src>
import functools

import jax
import jax.numpy as jnp
from jax.experimental import pallas as pl
from jax.experimental.pallas import tpu as pltpu

GAMMA = 2              # integer exponent; implemented as d * d
ALPHA = 1.0            # module default: torch.tensor(1.0)
SUM_ALPHA = 1.0        # torch.sum(alpha) for scalar alpha
EPS = 1e-9

_DEFAULT_BLOCK_BYTES = 4 * 1024 * 1024   # per-input block size target (f32)


def _focal_sum_kernel(x_ref, t_ref, out_ref, acc_ref, *,
                      block_rows, lane, valid_rows, need_mask):
    """Sum of (1-pt)^2 * log(pt+eps) over the whole slab (sign/alpha folded outside)."""
    i = pl.program_id(0)
    nb = pl.num_programs(0)

    x = x_ref[...]
    t = t_ref[...]

    # pt = p if y == 1 else (1 - p), in the soft-target form of the module.
    pt = t * x + (1.0 - t) * (1.0 - x)
    d = 1.0 - pt
    contrib = d * d * jnp.log(pt + EPS)          # gamma == 2 -> d*d, no float pow

    if need_mask:
        # Only the last (partial) block has invalid rows; garbage there (possibly
        # NaN from log of stale VMEM) is selected away, never accumulated.
        row = i * block_rows + jax.lax.broadcasted_iota(
            jnp.int32, (block_rows, lane), 0)
        contrib = jnp.where(row < valid_rows, contrib, 0.0)

    @pl.when(i == 0)
    def _():
        acc_ref[...] = jnp.zeros_like(acc_ref)

    if block_rows % 8 == 0:
        # Partial sums over groups of 8 rows: pure VPU vreg adds (layout no-op
        # reshape along the sublane tiling), no cross-lane movement per step.
        acc_ref[...] += contrib.reshape(block_rows // 8, 8, lane).sum(axis=0)
    else:
        # Tiny single-block case (block_rows == valid_rows, not a multiple of 8).
        acc_ref[...] += jnp.sum(contrib, axis=0, keepdims=True)

    @pl.when(i == nb - 1)
    def _():
        # Single deferred cross-lane/sublane reduction of the tiny accumulator.
        out_ref[0, 0] = jnp.sum(acc_ref[...])


def focal_loss(inp, tgt, *, max_block_rows=None):
    """inp, tgt: (N, C) probabilities / {0,1} (or soft) targets. Returns scalar loss."""
    n, c = inp.shape
    total = n * c

    x = inp.reshape(-1).astype(jnp.float32)
    t = tgt.reshape(-1).astype(jnp.float32)

    # Pick the widest lane-dense width that divides the flat size (no pad copy).
    lane = None
    for cand in (512, 256, 128):
        if total % cand == 0:
            lane = cand
            break
    if lane is None:
        # Irregular remainder: pad < 128 elements with x = t = 1 (pt = 1 -> zero term).
        lane = 128
        pad = (-total) % lane
        x = jnp.pad(x, (0, pad), constant_values=1.0)
        t = jnp.pad(t, (0, pad), constant_values=1.0)

    rows = x.shape[0] // lane
    x2 = x.reshape(rows, lane)
    t2 = t.reshape(rows, lane)

    if max_block_rows is None:
        max_block_rows = max(8, _DEFAULT_BLOCK_BYTES // (4 * lane))  # multiple of 8
    block_rows = rows if rows <= max_block_rows else max_block_rows
    n_blocks = pl.cdiv(rows, block_rows)
    need_mask = (rows % block_rows) != 0          # only possible in multi-block case
    acc_rows = 8 if (block_rows % 8 == 0) else 1

    kernel = functools.partial(
        _focal_sum_kernel,
        block_rows=block_rows, lane=lane, valid_rows=rows, need_mask=need_mask)

    total_sum = pl.pallas_call(
        kernel,
        out_shape=jax.ShapeDtypeStruct((1, 1), jnp.float32),
        grid_spec=pltpu.PrefetchScalarGridSpec(
            num_scalar_prefetch=0,
            grid=(n_blocks,),
            in_specs=[
                pl.BlockSpec((block_rows, lane), lambda i: (i, 0)),
                pl.BlockSpec((block_rows, lane), lambda i: (i, 0)),
            ],
            out_specs=pl.BlockSpec(memory_space=pltpu.SMEM),
            scratch_shapes=[pltpu.VMEM((acc_rows, lane), jnp.float32)],
        ),
        compiler_params=pltpu.CompilerParams(
            dimension_semantics=("arbitrary",),   # sequential accumulation over blocks
            vmem_limit_bytes=32 * 1024 * 1024,
        ),
    )(x2, t2)

    # -alpha * sum / sum(alpha), then mean over the TRUE number of rows.
    return (-ALPHA) * total_sum[0, 0] / jnp.float32(SUM_ALPHA * n)


def focal_loss_ref(inp, tgt):
    """Pure-JAX reference mirroring the PyTorch forward."""
    pt = tgt * inp + (1.0 - tgt) * (1.0 - inp)
    d = 1.0 - pt
    focal = -ALPHA * d * d * jnp.log(pt + EPS)
    return jnp.mean(jnp.sum(focal, axis=1) / SUM_ALPHA)


if __name__ == "__main__":
    key = jax.random.PRNGKey(0)
    ks = jax.random.split(key, 8)

    def check(inp, tgt, **kw):
        out = jax.block_until_ready(focal_loss(inp, tgt, **kw))
        ref = focal_loss_ref(inp, tgt)
        assert jnp.allclose(out, ref, rtol=1e-5, atol=1e-5), (out, ref)

    # 1) small multilabel problem: single tiny block (rows < 8 path, lane = 128)
    inp = jax.nn.sigmoid(jax.random.normal(ks[0], (16, 8), dtype=jnp.float32))
    tgt = (jax.random.uniform(ks[1], (16, 8)) > 0.5).astype(jnp.float32)
    check(inp, tgt)

    # 2) lane = 512, single block, rows not a multiple of 8
    inp = jax.nn.sigmoid(jax.random.normal(ks[2], (64, 40), dtype=jnp.float32))
    tgt = (jax.random.uniform(ks[3], (64, 40)) > 0.5).astype(jnp.float32)
    check(inp, tgt)

    # 3) multi-block grid + edge-block masking + (8, lane) accumulator path
    inp = jax.nn.sigmoid(jax.random.normal(ks[4], (100, 64), dtype=jnp.float32))
    tgt = (jax.random.uniform(ks[5], (100, 64)) > 0.5).astype(jnp.float32)
    check(inp, tgt, max_block_rows=8)

    # 4) flat size not a multiple of 128 -> minimal pad fallback
    inp = jax.nn.sigmoid(jax.random.normal(ks[6], (7, 10), dtype=jnp.float32))
    tgt = (jax.random.uniform(ks[7], (7, 10)) > 0.5).astype(jnp.float32)
    check(inp, tgt)

    print("KERNEL_OK")
</pallas_src>

<mosaic_0001>
module attributes {stable_mosaic.version = 11 : i64} {
  func.func @_focal_sum_kernel(%arg0: i32, %arg1: memref<1x128xf32, #tpu.memory_space<vmem>>, %arg2: memref<1x128xf32, #tpu.memory_space<vmem>>, %arg3: memref<1x1xf32, #tpu.memory_space<smem>>, %arg4: memref<1x128xf32, #tpu.memory_space<vmem>>) attributes {dimension_semantics = [#tpu.dimension_semantics<arbitrary>], iteration_bounds = array<i64: 1>, scalar_prefetch = 0 : i64, scratch_operands = 1 : i64, tpu.core_type = #tpu.core_type<tc>, window_params = [{transform_indices = @transform_0, window_bounds = array<i64: 1, 128>}, {transform_indices = @transform_1, window_bounds = array<i64: 1, 128>}, {transform_indices = @transform_2, window_bounds = array<i64: 1, 1>}]} {
    %c0 = arith.constant 0 : index
    %c0_0 = arith.constant 0 : index
    %0 = vector.load %arg1[%c0, %c0_0] : memref<1x128xf32, #tpu.memory_space<vmem>>, vector<1x128xf32>
    %c0_1 = arith.constant 0 : index
    %c0_2 = arith.constant 0 : index
    %1 = vector.load %arg2[%c0_1, %c0_2] : memref<1x128xf32, #tpu.memory_space<vmem>>, vector<1x128xf32>
    %2 = arith.mulf %1, %0 : vector<1x128xf32>
    %cst = arith.constant 1.000000e+00 : f32
    %3 = vector.broadcast %cst : f32 to vector<1x128xf32>
    %4 = arith.subf %3, %1 : vector<1x128xf32>
    %cst_3 = arith.constant 1.000000e+00 : f32
    %5 = vector.broadcast %cst_3 : f32 to vector<1x128xf32>
    %6 = arith.subf %5, %0 : vector<1x128xf32>
    %7 = arith.mulf %4, %6 : vector<1x128xf32>
    %8 = arith.addf %2, %7 : vector<1x128xf32>
    %cst_4 = arith.constant 1.000000e+00 : f32
    %9 = vector.broadcast %cst_4 : f32 to vector<1x128xf32>
    %10 = arith.subf %9, %8 : vector<1x128xf32>
    %11 = arith.mulf %10, %10 : vector<1x128xf32>
    %cst_5 = arith.constant 9.99999971E-10 : f32
    %12 = vector.broadcast %cst_5 : f32 to vector<1x128xf32>
    %13 = arith.addf %8, %12 : vector<1x128xf32>
    %14 = math.log %13 : vector<1x128xf32>
    %15 = arith.mulf %11, %14 : vector<1x128xf32>
    %c0_i32 = arith.constant 0 : i32
    %16 = arith.cmpi eq, %arg0, %c0_i32 : i32
    %17 = arith.extui %16 : i1 to i32
    %c0_i32_6 = arith.constant 0 : i32
    %18 = arith.cmpi ne, %17, %c0_i32_6 : i32
    scf.if %18 {
      %cst_14 = arith.constant 0.000000e+00 : f32
      %27 = vector.broadcast %cst_14 : f32 to vector<1x128xf32>
      %c0_15 = arith.constant 0 : index
      %c0_16 = arith.constant 0 : index
      %28 = vector.load %arg4[%c0_15, %c0_16] : memref<1x128xf32, #tpu.memory_space<vmem>>, vector<1x128xf32>
      tpu.vector_store %arg4[%c0_15, %c0_16], %27 {strides = array<i32>} : memref<1x128xf32, #tpu.memory_space<vmem>>, vector<1x128xf32>,
    } else {
    }
    %c0_7 = arith.constant 0 : index
    %c0_8 = arith.constant 0 : index
    %19 = vector.load %arg4[%c0_7, %c0_8] : memref<1x128xf32, #tpu.memory_space<vmem>>, vector<1x128xf32>
    %cst_9 = arith.constant dense<0.000000e+00> : vector<128xf32>
    %20 = vector.multi_reduction <add>, %15, %cst_9 [0] : vector<1x128xf32> to vector<128xf32>
    %21 = vector.shape_cast %20 : vector<128xf32> to vector<1x128xf32>
    %22 = arith.addf %19, %21 : vector<1x128xf32>
    %c0_10 = arith.constant 0 : index
    %c0_11 = arith.constant 0 : index
    %23 = vector.load %arg4[%c0_10, %c0_11] : memref<1x128xf32, #tpu.memory_space<vmem>>, vector<1x128xf32>
    tpu.vector_store %arg4[%c0_10, %c0_11], %22 {strides = array<i32>} : memref<1x128xf32, #tpu.memory_space<vmem>>, vector<1x128xf32>,
    %c0_i32_12 = arith.constant 0 : i32
    %24 = arith.cmpi eq, %arg0, %c0_i32_12 : i32
    %25 = arith.extui %24 : i1 to i32
    %c0_i32_13 = arith.constant 0 : i32
    %26 = arith.cmpi ne, %25, %c0_i32_13 : i32
    scf.if %26 {
      %c0_14 = arith.constant 0 : index
      %c0_15 = arith.constant 0 : index
      %27 = vector.load %arg4[%c0_14, %c0_15] : memref<1x128xf32, #tpu.memory_space<vmem>>, vector<1x128xf32>
      %28 = vector.shape_cast %27 : vector<1x128xf32> to vector<1x1x128xf32>
      %cst_16 = arith.constant dense<0.000000e+00> : vector<1xf32>
      %29 = vector.multi_reduction <add>, %28, %cst_16 [1, 2] : vector<1x1x128xf32> to vector<1xf32>
      %30 = vector.shape_cast %29 : vector<1xf32> to vector<1x1x1xf32>
      %31 = vector.extract %30[0, 0, 0] : f32 from vector<1x1x1xf32>
      %c0_17 = arith.constant 0 : index
      %c0_18 = arith.constant 0 : index
      %32 = memref.load %arg3[%c0_17, %c0_18] : memref<1x1xf32, #tpu.memory_space<smem>>
      memref.store %31, %arg3[%c0_17, %c0_18] : memref<1x1xf32, #tpu.memory_space<smem>>
    } else {
    }
    return
  }
  func.func @transform_0(%arg0: i32) -> (i32, i32) {
    %c0_i32 = arith.constant 0 : i32
    %c0_i32_0 = arith.constant 0 : i32
    return %arg0, %c0_i32 : i32, i32
  }
  func.func @transform_1(%arg0: i32) -> (i32, i32) {
    %c0_i32 = arith.constant 0 : i32
    %c0_i32_0 = arith.constant 0 : i32
    return %arg0, %c0_i32 : i32, i32
  }
  func.func @transform_2(%arg0: i32) -> (i32, i32) {
    %c0_i32 = arith.constant 0 : i32
    %c0_i32_0 = arith.constant 0 : i32
    %c0_i32_1 = arith.constant 0 : i32
    return %c0_i32, %c0_i32_0 : i32, i32
  }
}

</mosaic_0001>

<llo_original>
// kernel: tpu_custom_call.1
$region0: #{tpu_custom_call.1}
  #allocation0 [shape = 'u32[]', space=smem, size = 0x4, offset = 0x4, fixed_abs, tag = 'smem constant byte address 0x4 - core index']
  #allocation1 [shape = 'u32[144,128]{1,0:T(1,128)}', space=vmem, size = 0x12000, scoped, tag = 'internal scratch']
  #allocation2 [shape = 'f32[1,128]{1,0:T(1,128)}', space=vmem, size = 0x200, scoped, tag = 'scratch operand']
  %s0 = inlined_call_operand.hbm [shape: f32[1,128], index: 0, kind: input, shape index: {}]
  %s1 = inlined_call_operand.vmem [shape: f32[1,128], index: 1, kind: input, shape index: {}]
  %s2 = inlined_call_operand.hbm [shape: f32[1,1], index: 2, kind: output, shape index: {}]
  %s3 = sld [smem:[#allocation0]]
  $region30: #{tpu_custom_call.1} parent=0
    _
  %s5 = ssub.s32 1, %s3
  %s6 = scalar_select 0, %s5, %s3
  $region1: #{tpu_custom_call.1} parent=0
    #allocation3 [shape = 'u8[512]{0}', space=vmem, size = 0x400, scoped, tag = 'input window, operand 0, single buffered']
    #allocation4 [shape = 's32[1]{0}', space=sflag, size = 0x4, scoped, tag = 'scoped memory for tpu_custom_call.1']
    #allocation5 [shape = 's32[1]{0}', space=sflag, size = 0x4, scoped, tag = 'scoped memory for tpu_custom_call.1']
    #allocation6 [shape = 'u8[512]{0}', space=smem, size = 0x200, scoped, tag = 'output window, operand 0, single buffered']
    %7 = vsyncpa [#allocation4], 0
    %8 = vsyncpa [#allocation5], 0
    // Predicated region
    $region2: #{tpu_custom_call.1} parent=1 // pred_check
      _
    $region3: #{tpu_custom_call.1} parent=1 // pred_check_branch
      %10 = sbr.rel (0) target = $region5
    $region4: #{tpu_custom_call.1} parent=1 // pred_region
      %s12 = ssub.s32 16, 16
      %13 = vsyncadd [#allocation4], %s12
      %s15 = sshll.u32 [#allocation3], 4
      %s16 = int_to_ptr.vmem [resolvable:$true] %s15
      %18 = dma.hbm_to_vmem [thread:$0]  %s0, 16, %s16, [#allocation4]
    $region5: #{tpu_custom_call.1} parent=1 // pred_fallthru
      _
    // Predicated region
    $region6: #{tpu_custom_call.1} parent=1 // pred_check
      _
    $region7: #{tpu_custom_call.1} parent=1 // pred_check_branch
      %20 = sbr.rel (0) target = $region9
    $region8: #{tpu_custom_call.1} parent=1 // pred_region
      _
    $region9: #{tpu_custom_call.1} parent=1 // pred_fallthru
      _
    // Predicated region
    $region10: #{tpu_custom_call.1} parent=1 // pred_check
      _
    $region11: #{tpu_custom_call.1} parent=1 // pred_check_branch
      %22 = sbr.rel (0) target = $region13
    $region12: #{tpu_custom_call.1} parent=1 // pred_region
      %23 = dma.done [#allocation4], 16
    $region13: #{tpu_custom_call.1} parent=1 // pred_fallthru
      _
    %v24 = vld [vmem:[#allocation3] sm:$0x1]
    %v25 = vld [vmem:[%s1] sm:$0x1]
    %v26 = vmul.f32 %v25, %v24
    %v27 = vsub.f32 1.0, %v25
    %v28 = vsub.f32 1.0, %v24
    %v29 = vmul.f32 %v27, %v28
    %v30 = vadd.f32 %v26, %v29
    %v31 = vsub.f32 1.0, %v30
    %v32 = vmul.f32 %v31, %v31
    %v33 = vadd.f32 %v30, 1e-09
    %v34 = vlog2.pop %v33
    %v35 = vmul.f32 %v34, 0.6931472
    %v36 = vmul.f32 %v32, %v35
    %p37 = scmp.eq.s32.totalorder 0, 0
    // Predicated region
    $region14: #{tpu_custom_call.1} parent=1 // pred_check
      %p38 = pneg %p37
    $region15: #{tpu_custom_call.1} parent=1 // pred_check_branch
      %40 = sbr.rel (%p38) target = $region17
    $region16: #{tpu_custom_call.1} parent=1 // pred_region
      %41 = vst [vmem:[#allocation2] sm:$0x1] 0.0
    $region17: #{tpu_custom_call.1} parent=1 // pred_fallthru
      _
    %v42 = vld [vmem:[#allocation2] sm:$0x1]
    %v43 = vadd.f32 %v36, 0.0
    %v44 = vadd.f32 %v42, %v43
    %45 = vst [vmem:[#allocation2] sm:$0x1] %v44
    // Predicated region
    $region18: #{tpu_custom_call.1} parent=1 // pred_check
      %p46 = pneg %p37
    $region19: #{tpu_custom_call.1} parent=1 // pred_check_branch
      %48 = sbr.rel (%p46) target = $region21
    $region20: #{tpu_custom_call.1} parent=1 // pred_region
      %v49 = vld [vmem:[#allocation2] sm:$0x1]
      %vm50 = vcmask 1040384
      %v51 = vsel %vm50, %v49, 0.0
      %52 = vadd.xlane.f32.xlu0 %v51
      %v53 = vpop.xlane.xlu0 %52
      %v54 = vrot.slane %v53, 4
      %v55 = vadd.f32 %v53, %v54
      %v56 = vrot.slane %v55, 2
      %v57 = vadd.f32 %v55, %v56
      %v58 = vrot.slane %v57, 1
      %v59 = vadd.f32 %v57, %v58
      %s60 = vtos %v59
      %s61 = scalar_lea.smem [#allocation6], 0
      %62 = sst [smem:[%s61]] %s60
    $region21: #{tpu_custom_call.1} parent=1 // pred_fallthru
      _
    // Predicated region
    $region22: #{tpu_custom_call.1} parent=1 // pred_check
      _
    $region23: #{tpu_custom_call.1} parent=1 // pred_check_branch
      %64 = sbr.rel (0) target = $region25
    $region24: #{tpu_custom_call.1} parent=1 // pred_region
      %s66 = ssub.s32 16, 16
      %67 = vsyncadd [#allocation5], %s66
      %70 = dma.smem_to_hbm [#allocation6], 16, %s2, [#allocation5]
    $region25: #{tpu_custom_call.1} parent=1 // pred_fallthru
      _
    // Predicated region
    $region26: #{tpu_custom_call.1} parent=1 // pred_check
      _
    $region27: #{tpu_custom_call.1} parent=1 // pred_check_branch
      %72 = sbr.rel (0) target = $region29
    $region28: #{tpu_custom_call.1} parent=1 // pred_region
      %73 = dma.done [#allocation5], 16
    $region29: #{tpu_custom_call.1} parent=1 // pred_fallthru
      _
    %74 = sfence
    %75 = vsyncpa [#allocation4], 1
    %76 = vsyncpa [#allocation5], 1

</llo_original>
